<compile_context>
chip_gen: v7x
topology: tpu7x:2x2x1
jax: 0.10.0
libtpu: 0.0.40
codegen_flags: <defaults>
</compile_context>

<pallas_src>
import jax
import jax.numpy as jnp
from jax.experimental import pallas as pl
from jax.experimental.pallas import tpu as pltpu


def transition_kernel(x_ref, scale_ref, shift_ref, w_ref, o_ref):
    # x_ref:     (1, tH, W, Cin)          bf16 NHWC row-slab
    # scale_ref: (1, Cin)                 bf16, gamma / sqrt(var + eps)
    # shift_ref: (1, Cin)                 bf16, beta - mean * scale
    # w_ref:     (Cin, Cout)              bf16, 1x1 conv weight^T * 0.25 (pool folded)
    # o_ref:     (1, tH//2, W//2, Cout)   bf16
    x = x_ref[0]                                        # (tH, W, Cin) bf16
    tH, W, Cin = x.shape

    scale = scale_ref[...].reshape(1, 1, Cin)
    shift = shift_ref[...].reshape(1, 1, Cin)

    # BatchNorm (inference affine) + ReLU, in bf16 on the VPU.  f32 here would
    # double the VMEM-resident temporaries and shrink the feasible tile.
    y = jnp.maximum(x * scale + shift, 0.0)             # (tH, W, Cin) bf16

    # 2x2 SUM pool BEFORE the matmul (pool(y) @ W == pool(y @ W); the 1/4
    # average factor lives in w).  H-direction first: splitting the leading
    # (non-layout) dim is a free batch reshape and halves the data the
    # W-direction step has to touch.
    y = y.reshape(tH // 2, 2, W, Cin).sum(axis=1)        # (tH/2, W,   Cin)
    y = y.reshape(tH // 2, W // 2, 2, Cin).sum(axis=2)   # (tH/2, W/2, Cin)

    # 1x1 conv over channels == per-(pooled)pixel matmul on the MXU.
    # bf16 operands, f32 accumulation, bf16 store.
    m = (tH // 2) * (W // 2)
    z = jnp.dot(y.reshape(m, Cin), w_ref[...],
                preferred_element_type=jnp.float32)       # (m, Cout) f32
    o_ref[0] = z.reshape(tH // 2, W // 2, -1).astype(o_ref.dtype)


def _vmem_capacity_bytes():
    """Per-core VMEM capacity; conservative 64 MiB (v7x) fallback."""
    try:
        return int(pltpu.get_tpu_info().vmem_capacity_bytes)
    except Exception:
        return 64 * 1024 * 1024


def _pick_tile_h(N, H, W, Cin, Cout, budget_bytes):
    """Largest even tH dividing H such that (a) the double-buffered DMA blocks
    PLUS the live compute temporaries fit the VMEM budget and (b) the grid
    keeps >= 4 steps when possible (2 TCs on v7x + software-pipeline overlap)."""
    min_row_blocks = min(max(1, -(-4 // N)), max(1, H // 2))

    def step_bytes(tH):
        in_b = tH * W * Cin * 2                       # bf16 input block (DMA)
        out_b = (tH // 2) * (W // 2) * Cout * 2       # bf16 output block (DMA)
        # live in-kernel temporaries:
        bn = tH * W * Cin * 2                         # bf16 BN/ReLU result
        hpool = 2 * (tH // 2) * W * Cin * 2           # H-pooled (+ retile slack)
        pooled = (tH // 2) * (W // 2) * Cin * 2       # bf16 matmul LHS
        acc = (tH // 2) * (W // 2) * Cout * 4         # f32 matmul result
        const = 2 * (Cin * Cout * 2 + 2 * Cin * 2)    # weight + scale/shift (dbl buf)
        return 2 * (in_b + out_b) + bn + hpool + pooled + acc + const

    best = 2
    for tH in range(2, H + 1, 2):
        if H % tH:
            continue
        if H // tH < min_row_blocks:
            continue
        if step_bytes(tH) <= budget_bytes:
            best = tH
    return best


def transition_forward_nhwc(x_nhwc, scale, shift, w):
    """Fused BN(eval)+ReLU+1x1conv+AvgPool2d(2), NHWC in / NHWC out (bf16).

    x_nhwc : (N, H, W, Cin)  bf16 activations (channels on lanes)
    scale  : (Cin,)          bf16 = gamma / sqrt(var + eps)
    shift  : (Cin,)          bf16 = beta - mean * scale
    w      : (Cin, Cout)     bf16 = conv_weight^T * 0.25 (pool factor folded)
    returns (N, H//2, W//2, Cout) bf16
    """
    N, H, W, Cin = x_nhwc.shape
    Cout = w.shape[1]
    assert H % 2 == 0 and W % 2 == 0, "AvgPool2d(2) path assumes even H, W"

    capacity = _vmem_capacity_bytes()
    budget = capacity // 2
    vmem_limit = max(32 * 1024 * 1024,
                     min(capacity * 3 // 4, 96 * 1024 * 1024))

    tH = _pick_tile_h(N, H, W, Cin, Cout, budget)

    m_total = N * (H // 2) * (W // 2)
    cost = pl.CostEstimate(
        flops=2 * m_total * Cin * Cout + 4 * N * H * W * Cin,
        transcendentals=0,
        bytes_accessed=(N * H * W * Cin * 2          # bf16 activations in
                        + m_total * Cout * 2         # bf16 output
                        + Cin * Cout * 2 + 4 * Cin))  # weight + scale/shift

    return pl.pallas_call(
        transition_kernel,
        out_shape=jax.ShapeDtypeStruct((N, H // 2, W // 2, Cout), jnp.bfloat16),
        grid=(N, H // tH),
        in_specs=[
            pl.BlockSpec((1, tH, W, Cin), lambda n, h: (n, h, 0, 0)),
            pl.BlockSpec((1, Cin), lambda n, h: (0, 0)),
            pl.BlockSpec((1, Cin), lambda n, h: (0, 0)),
            pl.BlockSpec((Cin, Cout), lambda n, h: (0, 0)),
        ],
        out_specs=pl.BlockSpec((1, tH // 2, W // 2, Cout),
                               lambda n, h: (n, h, 0, 0)),
        compiler_params=pltpu.CompilerParams(
            dimension_semantics=("parallel", "parallel"),
            vmem_limit_bytes=vmem_limit),
        cost_estimate=cost,
    )(x_nhwc, scale.reshape(1, Cin), shift.reshape(1, Cin), w)


def transition_forward(x_nchw, gamma, beta, running_mean, running_var,
                       conv_w, eps=1e-5):
    """Matches Transition.forward (eval-mode BatchNorm). x_nchw: (N, Cin, H, W).

    The NCHW<->NHWC transposes below are extra HBM passes kept only to match
    the PyTorch interface; a fused DenseNet pipeline should keep activations
    NHWC/bf16 and call transition_forward_nhwc directly.
    """
    N, Cin, H, W = x_nchw.shape
    Cout = conv_w.shape[0]

    # Fold eval-mode BN into a per-channel scale/shift (computed in f32,
    # stored bf16 for the bf16 VPU path).
    scale_f32 = gamma / jnp.sqrt(running_var + eps)
    shift_f32 = beta - running_mean * scale_f32
    scale = scale_f32.astype(jnp.bfloat16)
    shift = shift_f32.astype(jnp.bfloat16)

    # 1x1 conv weight as (Cin, Cout) with the 2x2 average factor folded in.
    # NOTE: bf16 activations/weights (f32 accumulation) should be re-validated
    # at real DenseNet channel counts (Cin up to ~1024).
    w = (conv_w.reshape(Cout, Cin).T * 0.25).astype(jnp.bfloat16)

    # NCHW -> NHWC (channels on lanes); bf16 halves HBM traffic for the
    # dominant activation read.
    x = jnp.transpose(x_nchw, (0, 2, 3, 1)).astype(jnp.bfloat16)

    out_nhwc = transition_forward_nhwc(x, scale, shift, w)

    # Back to PyTorch NCHW layout / input dtype.
    return jnp.transpose(out_nhwc, (0, 3, 1, 2)).astype(x_nchw.dtype)


def _reference(x_nchw, gamma, beta, running_mean, running_var, conv_w, eps=1e-5):
    """Plain-JAX f32 reference with identical math (NCHW)."""
    xhat = (x_nchw - running_mean[None, :, None, None]) / jnp.sqrt(
        running_var[None, :, None, None] + eps)
    y = jnp.maximum(gamma[None, :, None, None] * xhat
                    + beta[None, :, None, None], 0.0)
    z = jnp.einsum('nchw,oc->nohw', y, conv_w.reshape(conv_w.shape[0], -1))
    N, Co, H, W = z.shape
    z = z.reshape(N, Co, H // 2, 2, W // 2, 2).mean(axis=(3, 5))
    return z


if __name__ == "__main__":
    key = jax.random.PRNGKey(0)
    N, Cin, H, W = 2, 4, 16, 16
    Cout = 2

    k_x, k_g, k_b, k_m, k_v, k_w = jax.random.split(key, 6)
    x = jax.random.normal(k_x, (N, Cin, H, W), dtype=jnp.float32)
    gamma = 1.0 + 0.1 * jax.random.normal(k_g, (Cin,), dtype=jnp.float32)
    beta = 0.1 * jax.random.normal(k_b, (Cin,), dtype=jnp.float32)
    running_mean = 0.1 * jax.random.normal(k_m, (Cin,), dtype=jnp.float32)
    running_var = 1.0 + 0.1 * jax.random.uniform(k_v, (Cin,), dtype=jnp.float32)
    conv_w = 0.2 * jax.random.normal(k_w, (Cout, Cin, 1, 1), dtype=jnp.float32)

    out = transition_forward(x, gamma, beta, running_mean, running_var, conv_w)
    out = jax.block_until_ready(out)

    ref = _reference(x, gamma, beta, running_mean, running_var, conv_w)
    assert out.shape == (N, Cout, H // 2, W // 2), out.shape
    # bf16 activations / weights / output (f32 MXU accumulation) -> loosened tolerance.
    assert jnp.allclose(out, ref, atol=5e-2, rtol=5e-2), "mismatch vs reference"

    print("KERNEL_OK")
</pallas_src>

<mosaic_0001>
module attributes {stable_mosaic.version = 11 : i64} {
  func.func @transition_kernel(%arg0: i32, %arg1: i32, %arg2: memref<1x8x16x4xbf16, #tpu.memory_space<vmem>>, %arg3: memref<1x4xbf16, #tpu.memory_space<vmem>>, %arg4: memref<1x4xbf16, #tpu.memory_space<vmem>>, %arg5: memref<4x2xbf16, #tpu.memory_space<vmem>>, %arg6: memref<1x4x8x2xbf16, #tpu.memory_space<vmem>>) attributes {dimension_semantics = [#tpu.dimension_semantics<parallel>, #tpu.dimension_semantics<parallel>], iteration_bounds = array<i64: 2, 2>, scalar_prefetch = 0 : i64, scratch_operands = 0 : i64, tpu.core_type = #tpu.core_type<tc>, window_params = [{transform_indices = @transform_0, window_bounds = array<i64: 1, 8, 16, 4>}, {pipeline_mode = #tpu.pipeline_mode<synchronous>, transform_indices = @transform_1, window_bounds = array<i64: 1, 4>}, {pipeline_mode = #tpu.pipeline_mode<synchronous>, transform_indices = @transform_2, window_bounds = array<i64: 1, 4>}, {pipeline_mode = #tpu.pipeline_mode<synchronous>, transform_indices = @transform_3, window_bounds = array<i64: 4, 2>}, {transform_indices = @transform_4, window_bounds = array<i64: 1, 4, 8, 2>}]} {
    %c0 = arith.constant 0 : index
    %c0_0 = arith.constant 0 : index
    %c0_1 = arith.constant 0 : index
    %c0_2 = arith.constant 0 : index
    %0 = vector.load %arg2[%c0, %c0_0, %c0_1, %c0_2] : memref<1x8x16x4xbf16, #tpu.memory_space<vmem>>, vector<1x8x16x4xbf16>
    %1 = vector.shape_cast %0 : vector<1x8x16x4xbf16> to vector<8x16x4xbf16>
    %c0_3 = arith.constant 0 : index
    %c0_4 = arith.constant 0 : index
    %2 = vector.load %arg3[%c0_3, %c0_4] : memref<1x4xbf16, #tpu.memory_space<vmem>>, vector<1x4xbf16>
    %3 = vector.shape_cast %2 : vector<1x4xbf16> to vector<1x1x4xbf16>
    %c0_5 = arith.constant 0 : index
    %c0_6 = arith.constant 0 : index
    %4 = vector.load %arg4[%c0_5, %c0_6] : memref<1x4xbf16, #tpu.memory_space<vmem>>, vector<1x4xbf16>
    %5 = vector.shape_cast %4 : vector<1x4xbf16> to vector<1x1x4xbf16>
    %6 = vector.broadcast %3 : vector<1x1x4xbf16> to vector<8x16x4xbf16>
    %7 = arith.mulf %1, %6 : vector<8x16x4xbf16>
    %8 = vector.broadcast %5 : vector<1x1x4xbf16> to vector<8x16x4xbf16>
    %9 = arith.addf %7, %8 : vector<8x16x4xbf16>
    %cst = arith.constant 0.000000e+00 : bf16
    %10 = vector.broadcast %cst : bf16 to vector<8x16x4xbf16>
    %11 = arith.maximumf %9, %10 : vector<8x16x4xbf16>
    %12 = vector.shape_cast %11 : vector<8x16x4xbf16> to vector<4x2x16x4xbf16>
    %13 = arith.extf %12 : vector<4x2x16x4xbf16> to vector<4x2x16x4xf32>
    %cst_7 = arith.constant dense<0.000000e+00> : vector<4x16x4xf32>
    %14 = vector.multi_reduction <add>, %13, %cst_7 [1] : vector<4x2x16x4xf32> to vector<4x16x4xf32>
    %15 = arith.truncf %14 : vector<4x16x4xf32> to vector<4x16x4xbf16>
    %16 = vector.shape_cast %15 : vector<4x16x4xbf16> to vector<4x8x2x4xbf16>
    %17 = arith.extf %16 : vector<4x8x2x4xbf16> to vector<4x8x2x4xf32>
    %cst_8 = arith.constant dense<0.000000e+00> : vector<4x8x4xf32>
    %18 = vector.multi_reduction <add>, %17, %cst_8 [2] : vector<4x8x2x4xf32> to vector<4x8x4xf32>
    %19 = arith.truncf %18 : vector<4x8x4xf32> to vector<4x8x4xbf16>
    %20 = vector.shape_cast %19 : vector<4x8x4xbf16> to vector<32x4xbf16>
    %c0_9 = arith.constant 0 : index
    %c0_10 = arith.constant 0 : index
    %21 = vector.load %arg5[%c0_9, %c0_10] : memref<4x2xbf16, #tpu.memory_space<vmem>>, vector<4x2xbf16>
    %cst_11 = arith.constant dense<0.000000e+00> : vector<32x2xf32>
    %22 = tpu.matmul %20, %21, %cst_11 {dimension_numbers = #tpu.dot_dimension_numbers<[1], [0], [0], [1], [0, 0, 1, 1], [], []>} : vector<32x4xbf16>, vector<4x2xbf16>, vector<32x2xf32> -> vector<32x2xf32>
    %23 = vector.shape_cast %22 : vector<32x2xf32> to vector<4x8x2xf32>
    %24 = arith.truncf %23 : vector<4x8x2xf32> to vector<4x8x2xbf16>
    %c0_12 = arith.constant 0 : index
    %c0_13 = arith.constant 0 : index
    %c0_14 = arith.constant 0 : index
    %c0_15 = arith.constant 0 : index
    %25 = vector.load %arg6[%c0_12, %c0_13, %c0_14, %c0_15] : memref<1x4x8x2xbf16, #tpu.memory_space<vmem>>, vector<1x4x8x2xbf16>
    %26 = vector.shape_cast %25 : vector<1x4x8x2xbf16> to vector<4x8x2xbf16>
    %27 = vector.shape_cast %24 : vector<4x8x2xbf16> to vector<1x4x8x2xbf16>
    tpu.vector_store %arg6[%c0_12, %c0_13, %c0_14, %c0_15], %27 {strides = array<i32>} : memref<1x4x8x2xbf16, #tpu.memory_space<vmem>>, vector<1x4x8x2xbf16>,
    return
  }
  func.func @transform_0(%arg0: i32, %arg1: i32) -> (i32, i32, i32, i32) {
    %c0_i32 = arith.constant 0 : i32
    %c0_i32_0 = arith.constant 0 : i32
    %c0_i32_1 = arith.constant 0 : i32
    return %arg0, %arg1, %c0_i32, %c0_i32_0 : i32, i32, i32, i32
  }
  func.func @transform_1(%arg0: i32, %arg1: i32) -> (i32, i32) {
    %c0_i32 = arith.constant 0 : i32
    %c0_i32_0 = arith.constant 0 : i32
    %c0_i32_1 = arith.constant 0 : i32
    return %c0_i32, %c0_i32_0 : i32, i32
  }
  func.func @transform_2(%arg0: i32, %arg1: i32) -> (i32, i32) {
    %c0_i32 = arith.constant 0 : i32
    %c0_i32_0 = arith.constant 0 : i32
    %c0_i32_1 = arith.constant 0 : i32
    return %c0_i32, %c0_i32_0 : i32, i32
  }
  func.func @transform_3(%arg0: i32, %arg1: i32) -> (i32, i32) {
    %c0_i32 = arith.constant 0 : i32
    %c0_i32_0 = arith.constant 0 : i32
    %c0_i32_1 = arith.constant 0 : i32
    return %c0_i32, %c0_i32_0 : i32, i32
  }
  func.func @transform_4(%arg0: i32, %arg1: i32) -> (i32, i32, i32, i32) {
    %c0_i32 = arith.constant 0 : i32
    %c0_i32_0 = arith.constant 0 : i32
    %c0_i32_1 = arith.constant 0 : i32
    return %arg0, %arg1, %c0_i32, %c0_i32_0 : i32, i32, i32, i32
  }
}

</mosaic_0001>

<llo_original>
// kernel: tpu_custom_call.1
$region0: #{tpu_custom_call.1}
  #allocation0 [shape = 'u32[]', space=smem, size = 0x4, offset = 0x4, fixed_abs, tag = 'smem constant byte address 0x4 - core index']
  #allocation1 [shape = 'u32[144,128]{1,0:T(1,128)}', space=vmem, size = 0x12000, scoped, tag = 'internal scratch']
  %s0 = inlined_call_operand.vmem [shape: bf16[2,16,16,4], index: 0, kind: input, shape index: {}]
  %s1 = inlined_call_operand.vmem [shape: bf16[1,4], index: 1, kind: input, shape index: {}]
  %s2 = inlined_call_operand.vmem [shape: bf16[1,4], index: 2, kind: input, shape index: {}]
  %s3 = inlined_call_operand.vmem [shape: bf16[4,2], index: 3, kind: input, shape index: {}]
  %s4 = inlined_call_operand.vmem [shape: bf16[2,8,8,2], index: 4, kind: output, shape index: {}]
  %s5 = sld [smem:[#allocation0]]
  $region49: #{tpu_custom_call.1} parent=0
    _
  %s7 = ssub.s32 1, %s5
  %s8 = scalar_select 0, %s7, %s5
  loop: start=0, step=1, limit=6
  $region2: #{tpu_custom_call.1} parent=0 // loop_pre_header
    _
  $region3: #{tpu_custom_call.1} parent=0 // loop_header
    %s10 = sphi 0, %s14
    %p11 = scmp.ge.s32.totalorder %s10, 6
    %s17 = sphi 0, %s29
    %s18 = sphi 0, %s25
    %s19 = sphi 0, %s17
    %s20 = sphi 0, %s18
    %s21 = sphi 0, %s19
    %s22 = sphi 0, %s20
    %s34 = sphi 0, %s36
    %s37 = sphi 0, %s34
    %s38 = sphi 0, %s37
    %s54 = sphi 0, %s38
    %s58 = sphi 0, %s58
    %s60 = sphi 0, %s58
    %s61 = sphi 0, %s60
    %s75 = sphi 0, %s61
    %s79 = sphi 0, %s79
    %s81 = sphi 0, %s79
    %s82 = sphi 0, %s81
    %s96 = sphi 0, %s82
    %s100 = sphi 0, %s100
    %s102 = sphi 0, %s100
    %s103 = sphi 0, %s102
    %s117 = sphi 0, %s103
    %s125 = sphi 0, %s127
    %s128 = sphi 0, %s125
    %s129 = sphi 0, %s128
    %s145 = sphi 0, %s129
  $region4: #{tpu_custom_call.1} parent=0 // loop_header_branch
    %13 = sbr.rel (%p11) target = $region8
  $region5: #{tpu_custom_call.1} parent=0 // loop_body
    %s15 = ssub.s32 %s10, 1
    %s16 = ssub.s32 %s10, 2
    %s23 = sadd.s32 1, %s18
    %p24 = scmp.ge.s32.totalorder %s23, 2
    %s25 = scalar_select %p24, 0, %s23
    %s26 = sadd.s32 1, %s17
    %s27 = scalar_select %p24, %s26, %s17
    %p28 = scmp.ge.s32.totalorder %s27, 2
    %s29 = scalar_select %p28, 0, %s27
    %s30 = ssub.s32 %s17, %s29
    %s31 = ssub.s32 %s18, %s25
    %s32 = sor.u32 %s30, %s31
    %p33 = scmp.eq.s32.totalorder %s32, 0
    %s35 = sadd.s32 %s34, 1
    %s36 = scalar_select %p33, %s34, %s35
    %p39 = pneg %p33
    %p40 = scmp.eq.s32.totalorder %s10, 3
    %p41 = por %p39, %p40
    %p42 = scmp.ne.s32.totalorder %s34, %s37
    %p43 = scmp.eq.s32.totalorder %s10, 0
    %p44 = por %p42, %p43
    %p45 = scmp.ne.s32.totalorder %s34, %s37
    %p46 = scmp.eq.s32.totalorder %s15, 3
    %p47 = por %p45, %p46
    %p48 = scmp.ne.s32.totalorder %s37, %s38
    %p49 = scmp.eq.s32.totalorder %s15, 0
    %p50 = por %p48, %p49
    %p51 = scmp.ne.s32.totalorder %s37, %s38
    %p52 = scmp.eq.s32.totalorder %s16, 3
    %p53 = por %p51, %p52
    %p55 = scmp.ne.s32.totalorder %s38, %s54
    %p56 = scmp.eq.s32.totalorder %s16, 0
    %p57 = por %p55, %p56
    %s59 = sadd.s32 %s58, 1
    %p62 = scmp.eq.s32.totalorder %s10, 3
    %p63 = scmp.ne.s32.totalorder %s58, %s60
    %p64 = scmp.eq.s32.totalorder %s10, 0
    %p65 = por %p63, %p64
    %p66 = scmp.ne.s32.totalorder %s58, %s60
    %p67 = scmp.eq.s32.totalorder %s15, 3
    %p68 = por %p66, %p67
    %p69 = scmp.ne.s32.totalorder %s60, %s61
    %p70 = scmp.eq.s32.totalorder %s15, 0
    %p71 = por %p69, %p70
    %p72 = scmp.ne.s32.totalorder %s60, %s61
    %p73 = scmp.eq.s32.totalorder %s16, 3
    %p74 = por %p72, %p73
    %p76 = scmp.ne.s32.totalorder %s61, %s75
    %p77 = scmp.eq.s32.totalorder %s16, 0
    %p78 = por %p76, %p77
    %s80 = sadd.s32 %s79, 1
    %p83 = scmp.eq.s32.totalorder %s10, 3
    %p84 = scmp.ne.s32.totalorder %s79, %s81
    %p85 = scmp.eq.s32.totalorder %s10, 0
    %p86 = por %p84, %p85
    %p87 = scmp.ne.s32.totalorder %s79, %s81
    %p88 = scmp.eq.s32.totalorder %s15, 3
    %p89 = por %p87, %p88
    %p90 = scmp.ne.s32.totalorder %s81, %s82
    %p91 = scmp.eq.s32.totalorder %s15, 0
    %p92 = por %p90, %p91
    %p93 = scmp.ne.s32.totalorder %s81, %s82
    %p94 = scmp.eq.s32.totalorder %s16, 3
    %p95 = por %p93, %p94
    %p97 = scmp.ne.s32.totalorder %s82, %s96
    %p98 = scmp.eq.s32.totalorder %s16, 0
    %p99 = por %p97, %p98
    %s101 = sadd.s32 %s100, 1
    %p104 = scmp.eq.s32.totalorder %s10, 3
    %p105 = scmp.ne.s32.totalorder %s100, %s102
    %p106 = scmp.eq.s32.totalorder %s10, 0
    %p107 = por %p105, %p106
    %p108 = scmp.ne.s32.totalorder %s100, %s102
    %p109 = scmp.eq.s32.totalorder %s15, 3
    %p110 = por %p108, %p109
    %p111 = scmp.ne.s32.totalorder %s102, %s103
    %p112 = scmp.eq.s32.totalorder %s15, 0
    %p113 = por %p111, %p112
    %p114 = scmp.ne.s32.totalorder %s102, %s103
    %p115 = scmp.eq.s32.totalorder %s16, 3
    %p116 = por %p114, %p115
    %p118 = scmp.ne.s32.totalorder %s103, %s117
    %p119 = scmp.eq.s32.totalorder %s16, 0
    %p120 = por %p118, %p119
    %s121 = ssub.s32 %s17, %s29
    %s122 = ssub.s32 %s18, %s25
    %s123 = sor.u32 %s121, %s122
    %p124 = scmp.eq.s32.totalorder %s123, 0
    %s126 = sadd.s32 %s125, 1
    %s127 = scalar_select %p124, %s125, %s126
    %p130 = pneg %p124
    %p131 = scmp.eq.s32.totalorder %s10, 3
    %p132 = por %p130, %p131
    %p133 = scmp.ne.s32.totalorder %s125, %s128
    %p134 = scmp.eq.s32.totalorder %s10, 0
    %p135 = por %p133, %p134
    %p136 = scmp.ne.s32.totalorder %s125, %s128
    %p137 = scmp.eq.s32.totalorder %s15, 3
    %p138 = por %p136, %p137
    %p139 = scmp.ne.s32.totalorder %s128, %s129
    %p140 = scmp.eq.s32.totalorder %s15, 0
    %p141 = por %p139, %p140
    %p142 = scmp.ne.s32.totalorder %s128, %s129
    %p143 = scmp.eq.s32.totalorder %s16, 3
    %p144 = por %p142, %p143
    %p146 = scmp.ne.s32.totalorder %s129, %s145
    %p147 = scmp.eq.s32.totalorder %s16, 0
    %p148 = por %p146, %p147
    %p149 = scmp.le.s32.totalorder 1, %s10
    %p150 = scmp.lt.s32.totalorder %s10, 5
    %p151 = pnand %p149, %p150
    %p152 = pneg %p151
    // Predicated region
    $region9: #{tpu_custom_call.1} parent=5 // pred_check
      _
    $region10: #{tpu_custom_call.1} parent=5 // pred_check_branch
      %154 = sbr.rel (%p151) target = $region12
    $region11: #{tpu_custom_call.1} parent=5 // pred_region
      %s155 = ssub.s32 %s10, 1
      // Predicated region
      $region13: #{tpu_custom_call.1} parent=11 // pred_check
        %p156 = pneg %p71
      $region14: #{tpu_custom_call.1} parent=11 // pred_check_branch
        %158 = sbr.rel (%p156) target = $region16
      $region15: #{tpu_custom_call.1} parent=11 // pred_region
        _
      $region16: #{tpu_custom_call.1} parent=11 // pred_fallthru
        _
      // Predicated region
      $region17: #{tpu_custom_call.1} parent=11 // pred_check
        %p159 = pneg %p92
      $region18: #{tpu_custom_call.1} parent=11 // pred_check_branch
        %161 = sbr.rel (%p159) target = $region20
      $region19: #{tpu_custom_call.1} parent=11 // pred_region
        _
      $region20: #{tpu_custom_call.1} parent=11 // pred_fallthru
        _
      // Predicated region
      $region21: #{tpu_custom_call.1} parent=11 // pred_check
        %p162 = pneg %p113
      $region22: #{tpu_custom_call.1} parent=11 // pred_check_branch
        %164 = sbr.rel (%p162) target = $region24
      $region23: #{tpu_custom_call.1} parent=11 // pred_region
        _
      $region24: #{tpu_custom_call.1} parent=11 // pred_fallthru
        _
    $region12: #{tpu_custom_call.1} parent=5 // pred_fallthru
      _
    %p165 = scmp.lt.s32.totalorder %s10, 4
    // Predicated region
    $region25: #{tpu_custom_call.1} parent=5 // pred_check
      %p166 = pneg %p165
    $region26: #{tpu_custom_call.1} parent=5 // pred_check_branch
      %168 = sbr.rel (%p166) target = $region28
    $region27: #{tpu_custom_call.1} parent=5 // pred_region
      // Predicated region
      $region29: #{tpu_custom_call.1} parent=27 // pred_check
        %p169 = pneg %p44
      $region30: #{tpu_custom_call.1} parent=27 // pred_check_branch
        %171 = sbr.rel (%p169) target = $region32
      $region31: #{tpu_custom_call.1} parent=27 // pred_region
        %s172 = smul.u32 8, %s18
        %p173 = scmp.lt.s32.totalorder %s17, 1
        %s174 = scalar_select %p173, %s17, 1
        %p175 = scmp.lt.s32.totalorder %s172, 15
        %s176 = scalar_select %p175, %s172, 15
        %s177 = smul.addr %s176, 2
        %s178 = smul.addr %s174, 32
        %s179 = sadd.s32 %s177, %s178
        %s180 = smul.addr %s179, 4
        %s181 = scalar_lea.vmem %s0, %s180
        %s182 = smul.u32 8, %s18
      $region32: #{tpu_custom_call.1} parent=27 // pred_fallthru
        _
    $region28: #{tpu_custom_call.1} parent=5 // pred_fallthru
      _
    %p183 = scmp.le.s32.totalorder 1, %s10
    %p184 = scmp.lt.s32.totalorder %s10, 5
    %p185 = pnand %p183, %p184
    %p186 = pneg %p185
    // Predicated region
    $region33: #{tpu_custom_call.1} parent=5 // pred_check
      _
    $region34: #{tpu_custom_call.1} parent=5 // pred_check_branch
      %188 = sbr.rel (%p185) target = $region36
    $region35: #{tpu_custom_call.1} parent=5 // pred_region
      %s189 = ssub.s32 %s10, 1
      %s190 = smul.u32 8, %s20
      %p191 = scmp.lt.s32.totalorder %s19, 1
      %s192 = scalar_select %p191, %s19, 1
      %p193 = scmp.lt.s32.totalorder %s190, 15
      %s194 = scalar_select %p193, %s190, 15
      %s195 = smul.addr %s194, 2
      %s196 = smul.addr %s192, 32
      %s197 = sadd.s32 %s195, %s196
      %s198 = smul.addr %s197, 4
      %s199 = scalar_lea.vmem %s0, %s198
      %p200 = pneg %p50
      %p201 = pneg %p47
      %p202 = pneg %p71
      %p203 = pneg %p68
      %p204 = pneg %p92
      %p205 = pneg %p89
      %p206 = pneg %p113
      %p207 = pneg %p110
      %p208 = pneg %p141
      %p209 = pneg %p138
      %s210 = smul.u32 4, %s20
      %p211 = scmp.lt.s32.totalorder %s19, 1
      %s212 = scalar_select %p211, %s19, 1
      %p213 = scmp.lt.s32.totalorder %s210, 7
      %s214 = scalar_select %p213, %s210, 7
      %s215 = smul.addr %s212, 8
      %s216 = sadd.s32 %s214, %s215
      %s217 = smul.addr %s216, 4
      %s218 = scalar_lea.vmem %s4, %s217
      %s219 = smul.u32 8, %s20
      %p220 = scmp.lt.s32.totalorder %s19, 1
      %s221 = scalar_select %p220, %s19, 1
      %p222 = scmp.lt.s32.totalorder %s219, 15
      %s223 = scalar_select %p222, %s219, 15
      %s224 = smul.addr %s223, 2
      %s225 = smul.addr %s221, 32
      %s226 = sadd.s32 %s224, %s225
      %s227 = smul.addr %s226, 4
      %s228 = scalar_lea.vmem %s0, %s227
      %s229 = smul.u32 8, %s20
      %s230 = smul.u32 4, %s20
      %p231 = scmp.lt.s32.totalorder %s19, 1
      %s232 = scalar_select %p231, %s19, 1
      %p233 = scmp.lt.s32.totalorder %s230, 7
      %s234 = scalar_select %p233, %s230, 7
      %s235 = smul.addr %s232, 8
      %s236 = sadd.s32 %s234, %s235
      %s237 = smul.addr %s236, 4
      %s238 = scalar_lea.vmem %s4, %s237
      %s239 = smul.u32 4, %s20
      %v241 = vld [vmem:[%s228] sm:$0xf]
      %v242 = vld [vmem:[%s228 + $0x4] sm:$0xf]
      %v243 = vld [vmem:[%s228 + $0x8] sm:$0xf]
      %v244 = vld [vmem:[%s228 + $0xc] sm:$0xf]
      %v245 = vld [vmem:[%s228 + $0x10] sm:$0xf]
      %v246 = vld [vmem:[%s228 + $0x14] sm:$0xf]
      %v247 = vld [vmem:[%s228 + $0x18] sm:$0xf]
      %v248 = vld [vmem:[%s228 + $0x1c] sm:$0xf]
      %v249 = vld [vmem:[%s228 + $0x20] sm:$0xf]
      %v250 = vld [vmem:[%s228 + $0x24] sm:$0xf]
      %v251 = vld [vmem:[%s228 + $0x28] sm:$0xf]
      %v252 = vld [vmem:[%s228 + $0x2c] sm:$0xf]
      %v253 = vld [vmem:[%s228 + $0x30] sm:$0xf]
      %v254 = vld [vmem:[%s228 + $0x34] sm:$0xf]
      %v255 = vld [vmem:[%s228 + $0x38] sm:$0xf]
      %v256 = vld [vmem:[%s228 + $0x3c] sm:$0xf]
      %v257 = vld [vmem:[%s1] sm:$0x1]
      %v258 = vld [vmem:[%s2] sm:$0x1]
      %v260 = vpack.i.b16 %v257, %v257
      %v262 = vlaneseq
      %v263 = vshrl.u32 %v262, 7
      %v264 = vsub.s32 0, %v263
      %v265 = vrot.slane %v260, %v264
      %v267 = vunpack.c.l.b16 %v265
      %v268 = vpack.c.b16 %v267, %v267
      %v270 = vmul.bf16 %v241, %v268
      %v271 = vmul.bf16 %v242, %v268
      %v272 = vmul.bf16 %v243, %v268
      %v273 = vmul.bf16 %v244, %v268
      %v274 = vmul.bf16 %v245, %v268
      %v275 = vmul.bf16 %v246, %v268
      %v276 = vmul.bf16 %v247, %v268
      %v277 = vmul.bf16 %v248, %v268
      %v278 = vmul.bf16 %v249, %v268
      %v279 = vmul.bf16 %v250, %v268
      %v280 = vmul.bf16 %v251, %v268
      %v281 = vmul.bf16 %v252, %v268
      %v282 = vmul.bf16 %v253, %v268
      %v283 = vmul.bf16 %v254, %v268
      %v284 = vmul.bf16 %v255, %v268
      %v285 = vmul.bf16 %v256, %v268
      %v287 = vpack.i.b16 %v258, %v258
      %v289 = vlaneseq
      %v290 = vshrl.u32 %v289, 7
      %v291 = vsub.s32 0, %v290
      %v292 = vrot.slane %v287, %v291
      %v294 = vunpack.c.l.b16 %v292
      %v295 = vpack.c.b16 %v294, %v294
      %v297 = vadd.bf16 %v270, %v295
      %v298 = vadd.bf16 %v271, %v295
      %v299 = vadd.bf16 %v272, %v295
      %v300 = vadd.bf16 %v273, %v295
      %v301 = vadd.bf16 %v274, %v295
      %v302 = vadd.bf16 %v275, %v295
      %v303 = vadd.bf16 %v276, %v295
      %v304 = vadd.bf16 %v277, %v295
      %v305 = vadd.bf16 %v278, %v295
      %v306 = vadd.bf16 %v279, %v295
      %v307 = vadd.bf16 %v280, %v295
      %v308 = vadd.bf16 %v281, %v295
      %v309 = vadd.bf16 %v282, %v295
      %v310 = vadd.bf16 %v283, %v295
      %v311 = vadd.bf16 %v284, %v295
      %v312 = vadd.bf16 %v285, %v295
      %v313 = vmax.bf16 %v297, 0
      %v314 = vmax.bf16 %v298, 0
      %v315 = vmax.bf16 %v299, 0
      %v316 = vmax.bf16 %v300, 0
      %v317 = vmax.bf16 %v301, 0
      %v318 = vmax.bf16 %v302, 0
      %v319 = vmax.bf16 %v303, 0
      %v320 = vmax.bf16 %v304, 0
      %v321 = vmax.bf16 %v305, 0
      %v322 = vmax.bf16 %v306, 0
      %v323 = vmax.bf16 %v307, 0
      %v324 = vmax.bf16 %v308, 0
      %v325 = vmax.bf16 %v309, 0
      %v326 = vmax.bf16 %v310, 0
      %v327 = vmax.bf16 %v311, 0
      %v328 = vmax.bf16 %v312, 0
      %v329 = vunpack.c.l.bf16 %v313
      %v330 = vunpack.c.l.bf16 %v314
      %v331 = vunpack.c.l.bf16 %v315
      %v332 = vunpack.c.l.bf16 %v316
      %v333 = vunpack.c.l.bf16 %v317
      %v334 = vunpack.c.l.bf16 %v318
      %v335 = vunpack.c.l.bf16 %v319
      %v336 = vunpack.c.l.bf16 %v320
      %v337 = vunpack.c.l.bf16 %v321
      %v338 = vunpack.c.l.bf16 %v322
      %v339 = vunpack.c.l.bf16 %v323
      %v340 = vunpack.c.l.bf16 %v324
      %v341 = vunpack.c.l.bf16 %v325
      %v342 = vunpack.c.l.bf16 %v326
      %v343 = vunpack.c.l.bf16 %v327
      %v344 = vunpack.c.l.bf16 %v328
      %vm345 = vcmask 31744
      %v346 = vsel %vm345, %v329, 0.0
      %v347 = vsel %vm345, %v331, 0.0
      %v348 = vadd.f32 %v346, %v347
      %v349 = vsel %vm345, %v330, 0.0
      %v350 = vsel %vm345, %v332, 0.0
      %v351 = vadd.f32 %v349, %v350
      %v352 = vsel %vm345, %v333, 0.0
      %v353 = vsel %vm345, %v335, 0.0
      %v354 = vadd.f32 %v352, %v353
      %v355 = vsel %vm345, %v334, 0.0
      %v356 = vsel %vm345, %v336, 0.0
      %v357 = vadd.f32 %v355, %v356
      %v358 = vsel %vm345, %v337, 0.0
      %v359 = vsel %vm345, %v339, 0.0
      %v360 = vadd.f32 %v358, %v359
      %v361 = vsel %vm345, %v338, 0.0
      %v362 = vsel %vm345, %v340, 0.0
      %v363 = vadd.f32 %v361, %v362
      %v364 = vsel %vm345, %v341, 0.0
      %v365 = vsel %vm345, %v343, 0.0
      %v366 = vadd.f32 %v364, %v365
      %v367 = vsel %vm345, %v342, 0.0
      %v368 = vsel %vm345, %v344, 0.0
      %v369 = vadd.f32 %v367, %v368
      %v370 = vpack.c.bf16 %v351, %v348
      %v371 = vpack.c.bf16 %v357, %v354
      %v372 = vpack.c.bf16 %v363, %v360
      %v373 = vpack.c.bf16 %v369, %v366
      %v378 = vcombine.high %v370, %v370
      %v380 = vunpack.c.l.s4 1966171168
      %v381 = vunpack.c.0.s8 %v380
      %v382 = vlaneseq
      %v383 = vshrl.u32 %v382, 7
      %v384 = vsub.s32 %v381, %v383
      %v385 = vrot.slane %v370, %v384
      %v387 = vunpack.c.l.s4 1966171168
      %v388 = vunpack.c.0.s8 %v387
      %v389 = vlaneseq
      %v390 = vshrl.u32 %v389, 7
      %v391 = vsub.s32 %v388, %v390
      %v392 = vrot.slane %v378, %v391
      %v393 = vcombine.high %v385, %v385
      %v394 = vcombine.high %v392, %v392
      %v396 = vunpack.c.l.s4 1966171168
      %v397 = vunpack.c.0.s8 %v396
      %v398 = vlaneseq
      %v399 = vshrl.u32 %v398, 7
      %v400 = vsub.s32 %v397, %v399
      %v401 = vrot.slane %v385, %v400
      %v403 = vunpack.c.l.s4 1966171168
      %v404 = vunpack.c.0.s8 %v403
      %v405 = vlaneseq
      %v406 = vshrl.u32 %v405, 7
      %v407 = vsub.s32 %v404, %v406
      %v408 = vrot.slane %v392, %v407
      %v410 = vunpack.c.l.s4 1966171168
      %v411 = vunpack.c.0.s8 %v410
      %v412 = vlaneseq
      %v413 = vshrl.u32 %v412, 7
      %v414 = vsub.s32 %v411, %v413
      %v415 = vrot.slane %v393, %v414
      %v417 = vunpack.c.l.s4 1966171168
      %v418 = vunpack.c.0.s8 %v417
      %v419 = vlaneseq
      %v420 = vshrl.u32 %v419, 7
      %v421 = vsub.s32 %v418, %v420
      %v422 = vrot.slane %v394, %v421
      %v423 = vcombine.high %v401, %v401
      %v424 = vcombine.high %v408, %v408
      %v425 = vcombine.high %v415, %v415
      %v426 = vcombine.high %v422, %v422
      %v427 = vcombine.high %v371, %v371
      %v429 = vunpack.c.l.s4 1966171168
      %v430 = vunpack.c.0.s8 %v429
      %v431 = vlaneseq
      %v432 = vshrl.u32 %v431, 7
      %v433 = vsub.s32 %v430, %v432
      %v434 = vrot.slane %v371, %v433
      %v436 = vunpack.c.l.s4 1966171168
      %v437 = vunpack.c.0.s8 %v436
      %v438 = vlaneseq
      %v439 = vshrl.u32 %v438, 7
      %v440 = vsub.s32 %v437, %v439
      %v441 = vrot.slane %v427, %v440
      %v442 = vcombine.high %v434, %v434
      %v443 = vcombine.high %v441, %v441
      %v445 = vunpack.c.l.s4 1966171168
      %v446 = vunpack.c.0.s8 %v445
      %v447 = vlaneseq
      %v448 = vshrl.u32 %v447, 7
      %v449 = vsub.s32 %v446, %v448
      %v450 = vrot.slane %v434, %v449
      %v452 = vunpack.c.l.s4 1966171168
      %v453 = vunpack.c.0.s8 %v452
      %v454 = vlaneseq
      %v455 = vshrl.u32 %v454, 7
      %v456 = vsub.s32 %v453, %v455
      %v457 = vrot.slane %v441, %v456
      %v459 = vunpack.c.l.s4 1966171168
      %v460 = vunpack.c.0.s8 %v459
      %v461 = vlaneseq
      %v462 = vshrl.u32 %v461, 7
      %v463 = vsub.s32 %v460, %v462
      %v464 = vrot.slane %v442, %v463
      %v466 = vunpack.c.l.s4 1966171168
      %v467 = vunpack.c.0.s8 %v466
      %v468 = vlaneseq
      %v469 = vshrl.u32 %v468, 7
      %v470 = vsub.s32 %v467, %v469
      %v471 = vrot.slane %v443, %v470
      %v472 = vcombine.high %v450, %v450
      %v473 = vcombine.high %v457, %v457
      %v474 = vcombine.high %v464, %v464
      %v475 = vcombine.high %v471, %v471
      %v476 = vcombine.high %v372, %v372
      %v478 = vunpack.c.l.s4 1966171168
      %v479 = vunpack.c.0.s8 %v478
      %v480 = vlaneseq
      %v481 = vshrl.u32 %v480, 7
      %v482 = vsub.s32 %v479, %v481
      %v483 = vrot.slane %v372, %v482
      %v485 = vunpack.c.l.s4 1966171168
      %v486 = vunpack.c.0.s8 %v485
      %v487 = vlaneseq
      %v488 = vshrl.u32 %v487, 7
      %v489 = vsub.s32 %v486, %v488
      %v490 = vrot.slane %v476, %v489
      %v491 = vcombine.high %v483, %v483
      %v492 = vcombine.high %v490, %v490
      %v494 = vunpack.c.l.s4 1966171168
      %v495 = vunpack.c.0.s8 %v494
      %v496 = vlaneseq
      %v497 = vshrl.u32 %v496, 7
      %v498 = vsub.s32 %v495, %v497
      %v499 = vrot.slane %v483, %v498
      %v501 = vunpack.c.l.s4 1966171168
      %v502 = vunpack.c.0.s8 %v501
      %v503 = vlaneseq
      %v504 = vshrl.u32 %v503, 7
      %v505 = vsub.s32 %v502, %v504
      %v506 = vrot.slane %v490, %v505
      %v508 = vunpack.c.l.s4 1966171168
      %v509 = vunpack.c.0.s8 %v508
      %v510 = vlaneseq
      %v511 = vshrl.u32 %v510, 7
      %v512 = vsub.s32 %v509, %v511
      %v513 = vrot.slane %v491, %v512
      %v515 = vunpack.c.l.s4 1966171168
      %v516 = vunpack.c.0.s8 %v515
      %v517 = vlaneseq
      %v518 = vshrl.u32 %v517, 7
      %v519 = vsub.s32 %v516, %v518
      %v520 = vrot.slane %v492, %v519
      %v521 = vcombine.high %v499, %v499
      %v522 = vcombine.high %v506, %v506
      %v523 = vcombine.high %v513, %v513
      %v524 = vcombine.high %v520, %v520
      %v525 = vcombine.high %v373, %v373
      %v527 = vunpack.c.l.s4 1966171168
      %v528 = vunpack.c.0.s8 %v527
      %v529 = vlaneseq
      %v530 = vshrl.u32 %v529, 7
      %v531 = vsub.s32 %v528, %v530
      %v532 = vrot.slane %v373, %v531
      %v534 = vunpack.c.l.s4 1966171168
      %v535 = vunpack.c.0.s8 %v534
      %v536 = vlaneseq
      %v537 = vshrl.u32 %v536, 7
      %v538 = vsub.s32 %v535, %v537
      %v539 = vrot.slane %v525, %v538
      %v540 = vcombine.high %v532, %v532
      %v541 = vcombine.high %v539, %v539
      %v543 = vunpack.c.l.s4 1966171168
      %v544 = vunpack.c.0.s8 %v543
      %v545 = vlaneseq
      %v546 = vshrl.u32 %v545, 7
      %v547 = vsub.s32 %v544, %v546
      %v548 = vrot.slane %v532, %v547
      %v550 = vunpack.c.l.s4 1966171168
      %v551 = vunpack.c.0.s8 %v550
      %v552 = vlaneseq
      %v553 = vshrl.u32 %v552, 7
      %v554 = vsub.s32 %v551, %v553
      %v555 = vrot.slane %v539, %v554
      %v557 = vunpack.c.l.s4 1966171168
      %v558 = vunpack.c.0.s8 %v557
      %v559 = vlaneseq
      %v560 = vshrl.u32 %v559, 7
      %v561 = vsub.s32 %v558, %v560
      %v562 = vrot.slane %v540, %v561
      %v564 = vunpack.c.l.s4 1966171168
      %v565 = vunpack.c.0.s8 %v564
      %v566 = vlaneseq
      %v567 = vshrl.u32 %v566, 7
      %v568 = vsub.s32 %v565, %v567
      %v569 = vrot.slane %v541, %v568
      %v570 = vcombine.high %v548, %v548
      %v571 = vcombine.high %v555, %v555
      %v572 = vcombine.high %v562, %v562
      %v573 = vcombine.high %v569, %v569
      %v606 = vunpack.c.l.bf16 %v401
      %v607 = vunpack.c.l.bf16 %v415
      %v608 = vunpack.c.l.bf16 %v423
      %v609 = vunpack.c.l.bf16 %v425
      %v610 = vunpack.c.l.bf16 %v408
      %v611 = vunpack.c.l.bf16 %v422
      %v612 = vunpack.c.l.bf16 %v424
      %v613 = vunpack.c.l.bf16 %v426
      %v614 = vunpack.c.l.bf16 %v450
      %v615 = vunpack.c.l.bf16 %v464
      %v616 = vunpack.c.l.bf16 %v472
      %v617 = vunpack.c.l.bf16 %v474
      %v618 = vunpack.c.l.bf16 %v457
      %v619 = vunpack.c.l.bf16 %v471
      %v620 = vunpack.c.l.bf16 %v473
      %v621 = vunpack.c.l.bf16 %v475
      %v622 = vunpack.c.l.bf16 %v499
      %v623 = vunpack.c.l.bf16 %v513
      %v624 = vunpack.c.l.bf16 %v521
      %v625 = vunpack.c.l.bf16 %v523
      %v626 = vunpack.c.l.bf16 %v506
      %v627 = vunpack.c.l.bf16 %v520
      %v628 = vunpack.c.l.bf16 %v522
      %v629 = vunpack.c.l.bf16 %v524
      %v630 = vunpack.c.l.bf16 %v548
      %v631 = vunpack.c.l.bf16 %v562
      %v632 = vunpack.c.l.bf16 %v570
      %v633 = vunpack.c.l.bf16 %v572
      %v634 = vunpack.c.l.bf16 %v555
      %v635 = vunpack.c.l.bf16 %v569
      %v636 = vunpack.c.l.bf16 %v571
      %v637 = vunpack.c.l.bf16 %v573
      %vm638 = vcmask 25600
      %v639 = vsel %vm638, %v606, 0.0
      %v640 = vrot.slane %v639, 4
      %v641 = vadd.f32 %v639, %v640
      %v642 = vrot.slane %v641, 2
      %v643 = vadd.f32 %v641, %v642
      %v644 = vrot.slane %v643, 1
      %v645 = vadd.f32 %v643, %v644
      %v646 = vsel %vm638, %v607, 0.0
      %v647 = vrot.slane %v646, 4
      %v648 = vadd.f32 %v646, %v647
      %v649 = vrot.slane %v648, 2
      %v650 = vadd.f32 %v648, %v649
      %v651 = vrot.slane %v650, 1
      %v652 = vadd.f32 %v650, %v651
      %v653 = vsel %vm638, %v608, 0.0
      %v654 = vrot.slane %v653, 4
      %v655 = vadd.f32 %v653, %v654
      %v656 = vrot.slane %v655, 2
      %v657 = vadd.f32 %v655, %v656
      %v658 = vrot.slane %v657, 1
      %v659 = vadd.f32 %v657, %v658
      %v660 = vsel %vm638, %v609, 0.0
      %v661 = vrot.slane %v660, 4
      %v662 = vadd.f32 %v660, %v661
      %v663 = vrot.slane %v662, 2
      %v664 = vadd.f32 %v662, %v663
      %v665 = vrot.slane %v664, 1
      %v666 = vadd.f32 %v664, %v665
      %v667 = vsel %vm638, %v610, 0.0
      %v668 = vrot.slane %v667, 4
      %v669 = vadd.f32 %v667, %v668
      %v670 = vrot.slane %v669, 2
      %v671 = vadd.f32 %v669, %v670
      %v672 = vrot.slane %v671, 1
      %v673 = vadd.f32 %v671, %v672
      %v674 = vsel %vm638, %v611, 0.0
      %v675 = vrot.slane %v674, 4
      %v676 = vadd.f32 %v674, %v675
      %v677 = vrot.slane %v676, 2
      %v678 = vadd.f32 %v676, %v677
      %v679 = vrot.slane %v678, 1
      %v680 = vadd.f32 %v678, %v679
      %v681 = vsel %vm638, %v612, 0.0
      %v682 = vrot.slane %v681, 4
      %v683 = vadd.f32 %v681, %v682
      %v684 = vrot.slane %v683, 2
      %v685 = vadd.f32 %v683, %v684
      %v686 = vrot.slane %v685, 1
      %v687 = vadd.f32 %v685, %v686
      %v688 = vsel %vm638, %v613, 0.0
      %v689 = vrot.slane %v688, 4
      %v690 = vadd.f32 %v688, %v689
      %v691 = vrot.slane %v690, 2
      %v692 = vadd.f32 %v690, %v691
      %v693 = vrot.slane %v692, 1
      %v694 = vadd.f32 %v692, %v693
      %v695 = vsel %vm638, %v614, 0.0
      %v696 = vrot.slane %v695, 4
      %v697 = vadd.f32 %v695, %v696
      %v698 = vrot.slane %v697, 2
      %v699 = vadd.f32 %v697, %v698
      %v700 = vrot.slane %v699, 1
      %v701 = vadd.f32 %v699, %v700
      %v702 = vsel %vm638, %v615, 0.0
      %v703 = vrot.slane %v702, 4
      %v704 = vadd.f32 %v702, %v703
      %v705 = vrot.slane %v704, 2
      %v706 = vadd.f32 %v704, %v705
      %v707 = vrot.slane %v706, 1
      %v708 = vadd.f32 %v706, %v707
      %v709 = vsel %vm638, %v616, 0.0
      %v710 = vrot.slane %v709, 4
      %v711 = vadd.f32 %v709, %v710
      %v712 = vrot.slane %v711, 2
      %v713 = vadd.f32 %v711, %v712
      %v714 = vrot.slane %v713, 1
      %v715 = vadd.f32 %v713, %v714
      %v716 = vsel %vm638, %v617, 0.0
      %v717 = vrot.slane %v716, 4
      %v718 = vadd.f32 %v716, %v717
      %v719 = vrot.slane %v718, 2
      %v720 = vadd.f32 %v718, %v719
      %v721 = vrot.slane %v720, 1
      %v722 = vadd.f32 %v720, %v721
      %v723 = vsel %vm638, %v618, 0.0
      %v724 = vrot.slane %v723, 4
      %v725 = vadd.f32 %v723, %v724
      %v726 = vrot.slane %v725, 2
      %v727 = vadd.f32 %v725, %v726
      %v728 = vrot.slane %v727, 1
      %v729 = vadd.f32 %v727, %v728
      %v730 = vsel %vm638, %v619, 0.0
      %v731 = vrot.slane %v730, 4
      %v732 = vadd.f32 %v730, %v731
      %v733 = vrot.slane %v732, 2
      %v734 = vadd.f32 %v732, %v733
      %v735 = vrot.slane %v734, 1
      %v736 = vadd.f32 %v734, %v735
      %v737 = vsel %vm638, %v620, 0.0
      %v738 = vrot.slane %v737, 4
      %v739 = vadd.f32 %v737, %v738
      %v740 = vrot.slane %v739, 2
      %v741 = vadd.f32 %v739, %v740
      %v742 = vrot.slane %v741, 1
      %v743 = vadd.f32 %v741, %v742
      %v744 = vsel %vm638, %v621, 0.0
      %v745 = vrot.slane %v744, 4
      %v746 = vadd.f32 %v744, %v745
      %v747 = vrot.slane %v746, 2
      %v748 = vadd.f32 %v746, %v747
      %v749 = vrot.slane %v748, 1
      %v750 = vadd.f32 %v748, %v749
      %v751 = vsel %vm638, %v622, 0.0
      %v752 = vrot.slane %v751, 4
      %v753 = vadd.f32 %v751, %v752
      %v754 = vrot.slane %v753, 2
      %v755 = vadd.f32 %v753, %v754
      %v756 = vrot.slane %v755, 1
      %v757 = vadd.f32 %v755, %v756
      %v758 = vsel %vm638, %v623, 0.0
      %v759 = vrot.slane %v758, 4
      %v760 = vadd.f32 %v758, %v759
      %v761 = vrot.slane %v760, 2
      %v762 = vadd.f32 %v760, %v761
      %v763 = vrot.slane %v762, 1
      %v764 = vadd.f32 %v762, %v763
      %v765 = vsel %vm638, %v624, 0.0
      %v766 = vrot.slane %v765, 4
      %v767 = vadd.f32 %v765, %v766
      %v768 = vrot.slane %v767, 2
      %v769 = vadd.f32 %v767, %v768
      %v770 = vrot.slane %v769, 1
      %v771 = vadd.f32 %v769, %v770
      %v772 = vsel %vm638, %v625, 0.0
      %v773 = vrot.slane %v772, 4
      %v774 = vadd.f32 %v772, %v773
      %v775 = vrot.slane %v774, 2
      %v776 = vadd.f32 %v774, %v775
      %v777 = vrot.slane %v776, 1
      %v778 = vadd.f32 %v776, %v777
      %v779 = vsel %vm638, %v626, 0.0
      %v780 = vrot.slane %v779, 4
      %v781 = vadd.f32 %v779, %v780
      %v782 = vrot.slane %v781, 2
      %v783 = vadd.f32 %v781, %v782
      %v784 = vrot.slane %v783, 1
      %v785 = vadd.f32 %v783, %v784
      %v786 = vsel %vm638, %v627, 0.0
      %v787 = vrot.slane %v786, 4
      %v788 = vadd.f32 %v786, %v787
      %v789 = vrot.slane %v788, 2
      %v790 = vadd.f32 %v788, %v789
      %v791 = vrot.slane %v790, 1
      %v792 = vadd.f32 %v790, %v791
      %v793 = vsel %vm638, %v628, 0.0
      %v794 = vrot.slane %v793, 4
      %v795 = vadd.f32 %v793, %v794
      %v796 = vrot.slane %v795, 2
      %v797 = vadd.f32 %v795, %v796
      %v798 = vrot.slane %v797, 1
      %v799 = vadd.f32 %v797, %v798
      %v800 = vsel %vm638, %v629, 0.0
      %v801 = vrot.slane %v800, 4
      %v802 = vadd.f32 %v800, %v801
      %v803 = vrot.slane %v802, 2
      %v804 = vadd.f32 %v802, %v803
      %v805 = vrot.slane %v804, 1
      %v806 = vadd.f32 %v804, %v805
      %v807 = vsel %vm638, %v630, 0.0
      %v808 = vrot.slane %v807, 4
      %v809 = vadd.f32 %v807, %v808
      %v810 = vrot.slane %v809, 2
      %v811 = vadd.f32 %v809, %v810
      %v812 = vrot.slane %v811, 1
      %v813 = vadd.f32 %v811, %v812
      %v814 = vsel %vm638, %v631, 0.0
      %v815 = vrot.slane %v814, 4
      %v816 = vadd.f32 %v814, %v815
      %v817 = vrot.slane %v816, 2
      %v818 = vadd.f32 %v816, %v817
      %v819 = vrot.slane %v818, 1
      %v820 = vadd.f32 %v818, %v819
      %v821 = vsel %vm638, %v632, 0.0
      %v822 = vrot.slane %v821, 4
      %v823 = vadd.f32 %v821, %v822
      %v824 = vrot.slane %v823, 2
      %v825 = vadd.f32 %v823, %v824
      %v826 = vrot.slane %v825, 1
      %v827 = vadd.f32 %v825, %v826
      %v828 = vsel %vm638, %v633, 0.0
      %v829 = vrot.slane %v828, 4
      %v830 = vadd.f32 %v828, %v829
      %v831 = vrot.slane %v830, 2
      %v832 = vadd.f32 %v830, %v831
      %v833 = vrot.slane %v832, 1
      %v834 = vadd.f32 %v832, %v833
      %v835 = vsel %vm638, %v634, 0.0
      %v836 = vrot.slane %v835, 4
      %v837 = vadd.f32 %v835, %v836
      %v838 = vrot.slane %v837, 2
      %v839 = vadd.f32 %v837, %v838
      %v840 = vrot.slane %v839, 1
      %v841 = vadd.f32 %v839, %v840
      %v842 = vsel %vm638, %v635, 0.0
      %v843 = vrot.slane %v842, 4
      %v844 = vadd.f32 %v842, %v843
      %v845 = vrot.slane %v844, 2
      %v846 = vadd.f32 %v844, %v845
      %v847 = vrot.slane %v846, 1
      %v848 = vadd.f32 %v846, %v847
      %v849 = vsel %vm638, %v636, 0.0
      %v850 = vrot.slane %v849, 4
      %v851 = vadd.f32 %v849, %v850
      %v852 = vrot.slane %v851, 2
      %v853 = vadd.f32 %v851, %v852
      %v854 = vrot.slane %v853, 1
      %v855 = vadd.f32 %v853, %v854
      %v856 = vsel %vm638, %v637, 0.0
      %v857 = vrot.slane %v856, 4
      %v858 = vadd.f32 %v856, %v857
      %v859 = vrot.slane %v858, 2
      %v860 = vadd.f32 %v858, %v859
      %v861 = vrot.slane %v860, 1
      %v862 = vadd.f32 %v860, %v861
      %v863 = vpack.c.bf16 %v645, %v645
      %v864 = vpack.c.bf16 %v652, %v652
      %v865 = vpack.c.bf16 %v659, %v659
      %v866 = vpack.c.bf16 %v666, %v666
      %v867 = vpack.c.bf16 %v673, %v673
      %v868 = vpack.c.bf16 %v680, %v680
      %v869 = vpack.c.bf16 %v687, %v687
      %v870 = vpack.c.bf16 %v694, %v694
      %v871 = vpack.c.bf16 %v701, %v701
      %v872 = vpack.c.bf16 %v708, %v708
      %v873 = vpack.c.bf16 %v715, %v715
      %v874 = vpack.c.bf16 %v722, %v722
      %v875 = vpack.c.bf16 %v729, %v729
      %v876 = vpack.c.bf16 %v736, %v736
      %v877 = vpack.c.bf16 %v743, %v743
      %v878 = vpack.c.bf16 %v750, %v750
      %v879 = vpack.c.bf16 %v757, %v757
      %v880 = vpack.c.bf16 %v764, %v764
      %v881 = vpack.c.bf16 %v771, %v771
      %v882 = vpack.c.bf16 %v778, %v778
      %v883 = vpack.c.bf16 %v785, %v785
      %v884 = vpack.c.bf16 %v792, %v792
      %v885 = vpack.c.bf16 %v799, %v799
      %v886 = vpack.c.bf16 %v806, %v806
      %v887 = vpack.c.bf16 %v813, %v813
      %v888 = vpack.c.bf16 %v820, %v820
      %v889 = vpack.c.bf16 %v827, %v827
      %v890 = vpack.c.bf16 %v834, %v834
      %v891 = vpack.c.bf16 %v841, %v841
      %v892 = vpack.c.bf16 %v848, %v848
      %v893 = vpack.c.bf16 %v855, %v855
      %v894 = vpack.c.bf16 %v862, %v862
      %v895 = vld [vmem:[%s3] sm:$0x3]
      %v928 = vunpack.c.l.b16 %v863
      %v929 = vunpack.c.l.b16 %v864
      %v930 = vunpack.c.l.b16 %v865
      %v931 = vunpack.c.l.b16 %v866
      %v932 = vunpack.c.l.b16 %v867
      %v933 = vunpack.c.l.b16 %v868
      %v934 = vunpack.c.l.b16 %v869
      %v935 = vunpack.c.l.b16 %v870
      %v936 = vunpack.c.l.b16 %v871
      %v937 = vunpack.c.l.b16 %v872
      %v938 = vunpack.c.l.b16 %v873
      %v939 = vunpack.c.l.b16 %v874
      %v940 = vunpack.c.l.b16 %v875
      %v941 = vunpack.c.l.b16 %v876
      %v942 = vunpack.c.l.b16 %v877
      %v943 = vunpack.c.l.b16 %v878
      %v944 = vunpack.c.l.b16 %v879
      %v945 = vunpack.c.l.b16 %v880
      %v946 = vunpack.c.l.b16 %v881
      %v947 = vunpack.c.l.b16 %v882
      %v948 = vunpack.c.l.b16 %v883
      %v949 = vunpack.c.l.b16 %v884
      %v950 = vunpack.c.l.b16 %v885
      %v951 = vunpack.c.l.b16 %v886
      %v952 = vunpack.c.l.b16 %v887
      %v953 = vunpack.c.l.b16 %v888
      %v954 = vunpack.c.l.b16 %v889
      %v955 = vunpack.c.l.b16 %v890
      %v956 = vunpack.c.l.b16 %v891
      %v957 = vunpack.c.l.b16 %v892
      %v958 = vunpack.c.l.b16 %v893
      %v959 = vunpack.c.l.b16 %v894
      %vm960 = vcmask 1041409
      %v961 = vsel %vm960, %v929, %v928
      %vm962 = vcmask 1042434
      %v963 = vsel %vm962, %v930, %v961
      %vm964 = vcmask 1043459
      %v965 = vsel %vm964, %v931, %v963
      %vm966 = vcmask 1044484
      %v967 = vsel %vm966, %v932, %v965
      %vm968 = vcmask 1045509
      %v969 = vsel %vm968, %v933, %v967
      %vm970 = vcmask 1046534
      %v971 = vsel %vm970, %v934, %v969
      %vm972 = vcmask 1047559
      %v973 = vsel %vm972, %v935, %v971
      %v974 = vsel %vm960, %v937, %v936
      %v975 = vsel %vm962, %v938, %v974
      %v976 = vsel %vm964, %v939, %v975
      %v977 = vsel %vm966, %v940, %v976
      %v978 = vsel %vm968, %v941, %v977
      %v979 = vsel %vm970, %v942, %v978
      %v980 = vsel %vm972, %v943, %v979
      %v981 = vsel %vm960, %v945, %v944
      %v982 = vsel %vm962, %v946, %v981
      %v983 = vsel %vm964, %v947, %v982
      %v984 = vsel %vm966, %v948, %v983
      %v985 = vsel %vm968, %v949, %v984
      %v986 = vsel %vm970, %v950, %v985
      %v987 = vsel %vm972, %v951, %v986
      %v988 = vsel %vm960, %v953, %v952
      %v989 = vsel %vm962, %v954, %v988
      %v990 = vsel %vm964, %v955, %v989
      %v991 = vsel %vm966, %v956, %v990
      %v992 = vsel %vm968, %v957, %v991
      %v993 = vsel %vm970, %v958, %v992
      %v994 = vsel %vm972, %v959, %v993
      %v995 = vpack.c.b16 %v980, %v973
      %v996 = vpack.c.b16 %v994, %v987
      %v998 = vsel %vm345, %v995, 0
      %v1001 = vsel %vm345, %v996, 0
      %vm1003 = vcmask 1041408
      %v1005 = vsel %vm1003, %v895, 0
      %1007 = vmatprep.subr.bf16.mxu0 0
      %1008 = vmatpush1.bf16.msra.mxu0 %v1005
      %1009 = vmatprep.subr.bf16.mxu0 0
      %1010 = vmatpush1.bf16.msra.mxu0 0
      %1011 = vmatprep.subr.bf16.mxu0 0
      %1012 = vmatpush1.bf16.msra.mxu0 0
      %1013 = vmatprep.subr.bf16.mxu0 0
      %1014 = vmatpush1.bf16.msra.mxu0 0
      %1015 = vmatprep.subr.bf16.mxu0 0
      %1016 = vmatpush1.bf16.msra.mxu0 0
      %1017 = vmatprep.subr.bf16.mxu0 0
      %1018 = vmatpush1.bf16.msra.mxu0 0
      %1019 = vmatprep.subr.bf16.mxu0 0
      %1020 = vmatpush1.bf16.msra.mxu0 0
      %1021 = vmatprep.subr.bf16.mxu0 0
      %1022 = vmatpush1.bf16.msra.mxu0 0
      %1023 = vmatprep.subr.bf16.mxu0 0
      %1024 = vmatpush1.bf16.msra.mxu0 0
      %1025 = vmatprep.subr.bf16.mxu0 0
      %1026 = vmatpush1.bf16.msra.mxu0 0
      %1027 = vmatprep.subr.bf16.mxu0 0
      %1028 = vmatpush1.bf16.msra.mxu0 0
      %1029 = vmatprep.subr.bf16.mxu0 0
      %1030 = vmatpush1.bf16.msra.mxu0 0
      %1031 = vmatprep.subr.bf16.mxu0 0
      %1032 = vmatpush1.bf16.msra.mxu0 0
      %1033 = vmatprep.subr.bf16.mxu0 0
      %1034 = vmatpush1.bf16.msra.mxu0 0
      %1035 = vmatprep.subr.bf16.mxu0 0
      %1036 = vmatpush1.bf16.msra.mxu0 0
      %1037 = vmatprep.subr.bf16.mxu0 0
      %1038 = vmatpush1.bf16.msra.mxu0 0
      %1039 = vmatprep.mubr.bf16.mxu0 0
      %1040 = vmatmul.mubr.bf16.gmra.mrb[0].mxu0 %v998
      %v1041 = vpop.f32.mrb[0].mxu0
      %v1042 = vadd.f32 0.0, %v1041
      %v1043 = vpop.f32.mrb[0].mxu0
      %v1044 = vpop.f32.mrb[0].mxu0
      %v1045 = vadd.f32 0.0, %v1044
      %v1046 = vpop.f32.mrb[0].mxu0
      %1047 = vmatprep.mubr.bf16.mxu0 0
      %1048 = vmatmul.mubr.bf16.gmra.mrb[0].mxu0 %v1001
      %v1049 = vpop.f32.mrb[0].mxu0
      %v1050 = vadd.f32 0.0, %v1049
      %v1051 = vpop.f32.mrb[0].mxu0
      %v1052 = vpop.f32.mrb[0].mxu0
      %v1053 = vadd.f32 0.0, %v1052
      %v1054 = vpop.f32.mrb[0].mxu0
      %1055 = vdwg.mxu0
      %v1056 = vpack.c.bf16 %v1042, %v1042
      %v1057 = vpack.c.bf16 %v1045, %v1045
      %v1058 = vpack.c.bf16 %v1050, %v1050
      %v1059 = vpack.c.bf16 %v1053, %v1053
      %vm1060 = vcmask 11264
      %1061 = vst.msk [vmem:[%s238] sm:$0xf] %vm1060, %v1056
      %1062 = vst.msk [vmem:[%s238 + $0x4] sm:$0xf] %vm1060, %v1057
      %1063 = vst.msk [vmem:[%s238 + $0x8] sm:$0xf] %vm1060, %v1058
      %1064 = vst.msk [vmem:[%s238 + $0xc] sm:$0xf] %vm1060, %v1059
      %s1065 = smul.u32 4, %s20
      %p1066 = scmp.lt.s32.totalorder %s19, 1
      %s1067 = scalar_select %p1066, %s19, 1
      %p1068 = scmp.lt.s32.totalorder %s1065, 7
      %s1069 = scalar_select %p1068, %s1065, 7
      %s1070 = smul.addr %s1067, 8
      %s1071 = sadd.s32 %s1069, %s1070
      %s1072 = smul.addr %s1071, 4
      %s1073 = scalar_lea.vmem %s4, %s1072
      // Predicated region
      $region37: #{tpu_custom_call.1} parent=35 // pred_check
        %p1074 = pneg %p138
      $region38: #{tpu_custom_call.1} parent=35 // pred_check_branch
        %1076 = sbr.rel (%p1074) target = $region40
      $region39: #{tpu_custom_call.1} parent=35 // pred_region
        %s1077 = smul.u32 4, %s20
      $region40: #{tpu_custom_call.1} parent=35 // pred_fallthru
        _
    $region36: #{tpu_custom_call.1} parent=5 // pred_fallthru
      _
    %p1078 = scmp.le.s32.totalorder 2, %s10
    // Predicated region
    $region41: #{tpu_custom_call.1} parent=5 // pred_check
      %p1079 = pneg %p1078
    $region42: #{tpu_custom_call.1} parent=5 // pred_check_branch
      %1081 = sbr.rel (%p1079) target = $region44
    $region43: #{tpu_custom_call.1} parent=5 // pred_region
      %s1082 = ssub.s32 %s10, 2
      // Predicated region
      $region45: #{tpu_custom_call.1} parent=43 // pred_check
        %p1083 = pneg %p144
      $region46: #{tpu_custom_call.1} parent=43 // pred_check_branch
        %1085 = sbr.rel (%p1083) target = $region48
      $region47: #{tpu_custom_call.1} parent=43 // pred_region
        %s1086 = smul.u32 4, %s22
        %p1087 = scmp.lt.s32.totalorder %s21, 1
        %s1088 = scalar_select %p1087, %s21, 1
        %p1089 = scmp.lt.s32.totalorder %s1086, 7
        %s1090 = scalar_select %p1089, %s1086, 7
        %s1091 = smul.addr %s1088, 8
        %s1092 = sadd.s32 %s1090, %s1091
        %s1093 = smul.addr %s1092, 4
        %s1094 = scalar_lea.vmem %s4, %s1093
      $region48: #{tpu_custom_call.1} parent=43 // pred_fallthru
        _
    $region44: #{tpu_custom_call.1} parent=5 // pred_fallthru
      _
  $region6: #{tpu_custom_call.1} parent=0 // loop_footer
    %s14 = sadd.s32 1, %s10
  $region7: #{tpu_custom_call.1} parent=0 // loop_footer_branch
    %9 = sbr.rel target = $region3
  $region8: #{tpu_custom_call.1} parent=0 // loop_exit
    _

</llo_original>
